<compile_context>
chip_gen: v6e
topology: v6e:2x2x1
jax: 0.10.0
libtpu: 0.0.40
codegen_flags: <defaults>
</compile_context>

<pallas_src>
import functools

import jax
import jax.numpy as jnp
from jax.experimental import pallas as pl
from jax.experimental.pallas import tpu as pltpu

_LANES = 128
_SUBLANES = 8


def _cdiv(a, b):
    return -(-a // b)


def _round_up(x, m):
    return _cdiv(x, m) * m


def _sublane_pack(dtype):
    # Minimum second-to-last tile dim for a dtype: 8 (32-bit), 16 (16-bit),
    # 32 (8-bit).
    return max(_SUBLANES, 32 // jnp.dtype(dtype).itemsize)


def _prep_input(x):
    """Flatten; keep narrow dtypes native so the kernel DMAs 1-2 bytes/elem."""
    x = jnp.ravel(x)
    dt = jnp.dtype(x.dtype)
    if dt == jnp.bool_:
        return x.astype(jnp.int8)      # 1 byte; avoids boolean block lowering
    if dt.itemsize > 4:
        return x.astype(jnp.float32)   # 64-bit types are not TPU-native
    return x


def _mpa_kernel(p_ref, t_ref, o_ref, *, rows, block_rows, blocks_per_core,
                mask_tail):
    i = pl.program_id(1)

    @pl.when(i == 0)
    def _():
        o_ref[...] = jnp.zeros_like(o_ref)

    p = p_ref[...].astype(jnp.float32)
    t = t_ref[...].astype(jnp.float32)

    # sum(2pt - p - t), FMA-friendly: 3 VALU ops per vreg.
    contrib = p * (2.0 * t - 1.0) - t

    if mask_tail:
        # Mask rows past the true extent (partial final block and any masked
        # duplicate block on core 1).  Uses the NOMINAL (unclamped) block index.
        c = pl.program_id(0)
        start = (c * blocks_per_core + i) * block_rows
        row_ids = jax.lax.broadcasted_iota(jnp.int32, contrib.shape, 0)
        contrib = jnp.where(start + row_ids < rows, contrib, 0.0)

    # Vreg-shaped accumulation directly into the per-core resident output
    # block: pure VPU adds in the hot loop; the single cross-lane reduction
    # happens in the wrapper over the tiny (2, 8, 128) result.
    o_ref[...] += contrib.reshape(-1, _SUBLANES, _LANES).sum(axis=0)


def _mpa_partial_sums(p2, t2, rows, pack, max_block_rows):
    """Per-core partial sums of (2pt - p - t) over a (rows, 128) view."""
    max_block_rows = max(pack, (int(max_block_rows) // pack) * pack)

    # Pick a block height (multiple of the dtype sublane packing, <= rows) that
    # splits the rows as evenly as possible across the two cores.
    brs0 = min(max_block_rows, max(pack, _round_up(_cdiv(rows, 2), pack)))
    bpc = _cdiv(_cdiv(rows, brs0), 2)                         # blocks per core
    block_rows = min(brs0, _round_up(_cdiv(rows, 2 * bpc), pack))
    num_blocks = _cdiv(rows, block_rows)
    mask_tail = (num_blocks != 2 * bpc) or (num_blocks * block_rows != rows)

    def in_map(c, i):
        # Clamp so a (masked) trailing duplicate block never indexes past the
        # array; its contribution is zeroed in-kernel via the nominal index.
        return (jnp.minimum(c * bpc + i, num_blocks - 1), 0)

    kernel = functools.partial(
        _mpa_kernel, rows=rows, block_rows=block_rows,
        blocks_per_core=bpc, mask_tail=mask_tail)

    bytes_accessed = rows * _LANES * (p2.dtype.itemsize + t2.dtype.itemsize)
    bytes_accessed += 2 * _SUBLANES * _LANES * 4

    return pl.pallas_call(
        kernel,
        out_shape=jax.ShapeDtypeStruct((2, _SUBLANES, _LANES), jnp.float32),
        grid_spec=pltpu.PrefetchScalarGridSpec(
            num_scalar_prefetch=0,
            grid=(2, bpc),
            in_specs=[
                pl.BlockSpec((block_rows, _LANES), in_map),
                pl.BlockSpec((block_rows, _LANES), in_map),
            ],
            out_specs=pl.BlockSpec((None, _SUBLANES, _LANES),
                                   lambda c, i: (c, 0, 0)),
        ),
        compiler_params=pltpu.CompilerParams(
            dimension_semantics=("parallel", "arbitrary")),
        cost_estimate=pl.CostEstimate(
            flops=3 * rows * _LANES, transcendentals=0,
            bytes_accessed=bytes_accessed),
    )(p2, t2)


def mean_pixel_accuracy(preds, target, eps=1e-5, block_rows=4096):
    """Pallas implementation of MeanPixelAccuracy.forward.

    Returns (tp + tn + eps) / (tp + tn + fp + fn + eps) as a float32 scalar.
    NOTE: n is represented in float32 for the final ratio; for n > 2**24 the
    resulting relative error is ~1e-7 (negligible for an accuracy metric).
    """
    p = _prep_input(preds)
    t = _prep_input(target)
    if p.shape[0] != t.shape[0]:
        raise ValueError("preds and target must have the same number of elements")
    n = p.shape[0]
    eps = float(eps)

    pack = max(_sublane_pack(p.dtype), _sublane_pack(t.dtype))
    rows = n // _LANES

    s_main = jnp.float32(0.0)
    n_main = 0
    if rows >= 2 * pack:  # enough rows for at least one block per core
        n_main = rows * _LANES
        p_main = p if n_main == n else jax.lax.slice(p, (0,), (n_main,))
        t_main = t if n_main == n else jax.lax.slice(t, (0,), (n_main,))
        partial = _mpa_partial_sums(
            p_main.reshape(rows, _LANES), t_main.reshape(rows, _LANES),
            rows, pack, block_rows)
        s_main = jnp.sum(partial)

    if n_main < n:
        # Ragged tail (< 128 elements) or tiny input: plain jnp epilogue.
        pt = p[n_main:].astype(jnp.float32)
        tt = t[n_main:].astype(jnp.float32)
        s_tail = jnp.sum(pt * (2.0 * tt - 1.0) - tt)
    else:
        s_tail = jnp.float32(0.0)

    s = s_main + s_tail
    nf = jnp.float32(n)
    # tp + tn = n + s ; tp + tn + fp + fn = n
    return (nf + s + eps) / (nf + eps)


def _reference(preds, target, eps=1e-5):
    p = jnp.ravel(preds).astype(jnp.float32)
    t = jnp.ravel(target).astype(jnp.float32)
    tp = jnp.sum(p * t)
    fp = jnp.sum(p * (1.0 - t))
    fn = jnp.sum((1.0 - p) * t)
    tn = jnp.sum((1.0 - p) * (1.0 - t))
    return (tp + tn + eps) / (tp + tn + fp + fn + eps)


if __name__ == "__main__":
    key = jax.random.PRNGKey(0)
    k1, k2, k3, k4, k5, k6 = jax.random.split(key, 6)

    # 1) Soft f32 predictions vs f32 binary labels (NCHW segmentation-like).
    shape = (2, 4, 16, 16)
    preds_f = jax.random.uniform(k1, shape, dtype=jnp.float32)
    target_f = jax.random.bernoulli(k2, 0.5, shape).astype(jnp.float32)
    acc = jax.block_until_ready(mean_pixel_accuracy(preds_f, target_f))
    ref = _reference(preds_f, target_f)
    assert jnp.allclose(acc, ref, rtol=2e-5, atol=1e-6), (acc, ref)

    # 2) Native int8 labels (no wrapper up-cast) + partial final block path.
    shape2 = (3, 4, 32, 32)
    preds2 = jax.random.uniform(k3, shape2, dtype=jnp.float32)
    target2 = jax.random.bernoulli(k4, 0.5, shape2).astype(jnp.int8)
    acc2 = jax.block_until_ready(mean_pixel_accuracy(preds2, target2))
    ref2 = _reference(preds2, target2)
    assert jnp.allclose(acc2, ref2, rtol=2e-5, atol=1e-6), (acc2, ref2)

    # 3) Ragged length (n % 128 != 0): <128-element tail folded in the wrapper.
    n3 = 2048 + 37
    preds3 = jax.random.uniform(k5, (n3,), dtype=jnp.float32)
    target3 = jax.random.bernoulli(k6, 0.5, (n3,)).astype(jnp.float32)
    acc3 = jax.block_until_ready(mean_pixel_accuracy(preds3, target3))
    ref3 = _reference(preds3, target3)
    assert jnp.allclose(acc3, ref3, rtol=2e-5, atol=1e-6), (acc3, ref3)

    print("KERNEL_OK")
</pallas_src>

<mosaic_0001>
module attributes {stable_mosaic.version = 11 : i64} {
  func.func @_mpa_kernel(%arg0: i32, %arg1: i32, %arg2: memref<8x128xf32, #tpu.memory_space<vmem>>, %arg3: memref<8x128xf32, #tpu.memory_space<vmem>>, %arg4: memref<1x8x128xf32, #tpu.memory_space<vmem>>) attributes {dimension_semantics = [#tpu.dimension_semantics<parallel>, #tpu.dimension_semantics<arbitrary>], iteration_bounds = array<i64: 2, 1>, scalar_prefetch = 0 : i64, scratch_operands = 0 : i64, tpu.core_type = #tpu.core_type<tc>, window_params = [{transform_indices = @transform_0, window_bounds = array<i64: 8, 128>}, {transform_indices = @transform_1, window_bounds = array<i64: 8, 128>}, {transform_indices = @transform_2, window_bounds = array<i64: 1, 8, 128>}]} {
    %c0_i32 = arith.constant 0 : i32
    %0 = arith.cmpi eq, %arg1, %c0_i32 : i32
    %1 = arith.extui %0 : i1 to i32
    %c0_i32_0 = arith.constant 0 : i32
    %2 = arith.cmpi ne, %1, %c0_i32_0 : i32
    scf.if %2 {
      %cst_12 = arith.constant 0.000000e+00 : f32
      %19 = vector.broadcast %cst_12 : f32 to vector<8x128xf32>
      %c0_13 = arith.constant 0 : index
      %c0_14 = arith.constant 0 : index
      %c0_15 = arith.constant 0 : index
      %20 = vector.load %arg4[%c0_13, %c0_14, %c0_15] : memref<1x8x128xf32, #tpu.memory_space<vmem>>, vector<1x8x128xf32>
      %21 = vector.shape_cast %20 : vector<1x8x128xf32> to vector<8x128xf32>
      %22 = vector.shape_cast %19 : vector<8x128xf32> to vector<1x8x128xf32>
      tpu.vector_store %arg4[%c0_13, %c0_14, %c0_15], %22 {strides = array<i32>} : memref<1x8x128xf32, #tpu.memory_space<vmem>>, vector<1x8x128xf32>,
    } else {
    }
    %c0 = arith.constant 0 : index
    %c0_1 = arith.constant 0 : index
    %3 = vector.load %arg2[%c0, %c0_1] : memref<8x128xf32, #tpu.memory_space<vmem>>, vector<8x128xf32>
    %c0_2 = arith.constant 0 : index
    %c0_3 = arith.constant 0 : index
    %4 = vector.load %arg3[%c0_2, %c0_3] : memref<8x128xf32, #tpu.memory_space<vmem>>, vector<8x128xf32>
    %cst = arith.constant 2.000000e+00 : f32
    %5 = vector.broadcast %cst : f32 to vector<8x128xf32>
    %6 = arith.mulf %5, %4 : vector<8x128xf32>
    %cst_4 = arith.constant 1.000000e+00 : f32
    %7 = vector.broadcast %cst_4 : f32 to vector<8x128xf32>
    %8 = arith.subf %6, %7 : vector<8x128xf32>
    %9 = arith.mulf %3, %8 : vector<8x128xf32>
    %10 = arith.subf %9, %4 : vector<8x128xf32>
    %c0_5 = arith.constant 0 : index
    %c0_6 = arith.constant 0 : index
    %c0_7 = arith.constant 0 : index
    %11 = vector.load %arg4[%c0_5, %c0_6, %c0_7] : memref<1x8x128xf32, #tpu.memory_space<vmem>>, vector<1x8x128xf32>
    %12 = vector.shape_cast %11 : vector<1x8x128xf32> to vector<8x128xf32>
    %13 = vector.shape_cast %10 : vector<8x128xf32> to vector<1x8x128xf32>
    %cst_8 = arith.constant dense<0.000000e+00> : vector<8x128xf32>
    %14 = vector.multi_reduction <add>, %13, %cst_8 [0] : vector<1x8x128xf32> to vector<8x128xf32>
    %15 = arith.addf %12, %14 : vector<8x128xf32>
    %c0_9 = arith.constant 0 : index
    %c0_10 = arith.constant 0 : index
    %c0_11 = arith.constant 0 : index
    %16 = vector.load %arg4[%c0_9, %c0_10, %c0_11] : memref<1x8x128xf32, #tpu.memory_space<vmem>>, vector<1x8x128xf32>
    %17 = vector.shape_cast %16 : vector<1x8x128xf32> to vector<8x128xf32>
    %18 = vector.shape_cast %15 : vector<8x128xf32> to vector<1x8x128xf32>
    tpu.vector_store %arg4[%c0_9, %c0_10, %c0_11], %18 {strides = array<i32>} : memref<1x8x128xf32, #tpu.memory_space<vmem>>, vector<1x8x128xf32>,
    return
  }
  func.func @transform_0(%arg0: i32, %arg1: i32) -> (i32, i32) {
    %c1_i32 = arith.constant 1 : i32
    %0 = arith.muli %arg0, %c1_i32 : i32
    %1 = arith.addi %0, %arg1 : i32
    %c1_i32_0 = arith.constant 1 : i32
    %2 = arith.minsi %1, %c1_i32_0 : i32
    %c0_i32 = arith.constant 0 : i32
    %c0_i32_1 = arith.constant 0 : i32
    return %2, %c0_i32 : i32, i32
  }
  func.func @transform_1(%arg0: i32, %arg1: i32) -> (i32, i32) {
    %c1_i32 = arith.constant 1 : i32
    %0 = arith.muli %arg0, %c1_i32 : i32
    %1 = arith.addi %0, %arg1 : i32
    %c1_i32_0 = arith.constant 1 : i32
    %2 = arith.minsi %1, %c1_i32_0 : i32
    %c0_i32 = arith.constant 0 : i32
    %c0_i32_1 = arith.constant 0 : i32
    return %2, %c0_i32 : i32, i32
  }
  func.func @transform_2(%arg0: i32, %arg1: i32) -> (i32, i32, i32) {
    %c0_i32 = arith.constant 0 : i32
    %c0_i32_0 = arith.constant 0 : i32
    %c0_i32_1 = arith.constant 0 : i32
    return %arg0, %c0_i32, %c0_i32_0 : i32, i32, i32
  }
}

</mosaic_0001>

<llo_original>
// kernel: tpu_custom_call.1
$region0: #{tpu_custom_call.1}
  #allocation0 [shape = 'u32[]', space=smem, size = 0x4, offset = 0x4, fixed_abs, tag = 'smem constant byte address 0x4 - core index']
  #allocation1 [shape = 'u32[144,128]{1,0:T(1,128)}', space=vmem, size = 0x12000, scoped, tag = 'internal scratch']
  %s0 = inlined_call_operand.hbm [shape: f32[16,128], index: 0, kind: input, shape index: {}]
  %s1 = inlined_call_operand.hbm [shape: f32[16,128], index: 1, kind: input, shape index: {}]
  %s2 = inlined_call_operand.hbm [shape: f32[2,8,128], index: 2, kind: output, shape index: {}]
  %s3 = sld [smem:[#allocation0]]
  $region53: #{tpu_custom_call.1} parent=0
    _
  %s5 = ssub.s32 1, %s3
  %s6 = scalar_select 0, %s5, %s3
  $region1: #{tpu_custom_call.1} parent=0
    #allocation2 [shape = 'u8[8192]{0}', space=vmem, size = 0x2000, scoped, tag = 'input window, operand 0']
    #allocation3 [shape = 's32[2]{0}', space=sflag, size = 0x8, scoped, tag = 'scoped memory for tpu_custom_call.1']
    #allocation4 [shape = 's32[2]{0}', space=sflag, size = 0x8, scoped, tag = 'scoped memory for tpu_custom_call.1']
    #allocation5 [shape = 'u8[8192]{0}', space=vmem, size = 0x2000, scoped, tag = 'input window, operand 1']
    #allocation6 [shape = 's32[2]{0}', space=sflag, size = 0x8, scoped, tag = 'scoped memory for tpu_custom_call.1']
    #allocation7 [shape = 'u8[8192]{0}', space=vmem, size = 0x2000, scoped, tag = 'output window, operand 0']
    %7 = vsyncpa [#allocation3], 0
    %s8 = scalar_lea.sflag [#allocation3], 1
    %9 = vsyncpa %s8, 0
    %10 = vsyncpa [#allocation6], 0
    %s11 = scalar_lea.sflag [#allocation6], 1
    %12 = vsyncpa %s11, 0
    %13 = vsyncpa [#allocation4], 0
    %s14 = scalar_lea.sflag [#allocation4], 1
    %15 = vsyncpa %s14, 0
    loop: start=0, step=1, limit=4
    $region2: #{tpu_custom_call.1} parent=1 // loop_pre_header
      _
    $region3: #{tpu_custom_call.1} parent=1 // loop_header
      %s17 = sphi 0, %s21
      %p18 = scmp.ge.s32.totalorder %s17, 4
      %s24 = sphi 0, %s36
      %s25 = sphi 0, %s32
      %s26 = sphi 0, %s24
      %s27 = sphi 0, %s25
      %s28 = sphi 0, %s26
      %s29 = sphi 0, %s27
      %s45 = sphi 0, %s47
      %s48 = sphi 0, %s45
      %s49 = sphi 0, %s48
      %s65 = sphi 0, %s49
      %s77 = sphi 0, %s79
      %s80 = sphi 0, %s77
      %s81 = sphi 0, %s80
      %s97 = sphi 0, %s81
      %s103 = sphi 0, %s105
      %s106 = sphi 0, %s103
      %s107 = sphi 0, %s106
      %s123 = sphi 0, %s107
    $region4: #{tpu_custom_call.1} parent=1 // loop_header_branch
      %20 = sbr.rel (%p18) target = $region8
    $region5: #{tpu_custom_call.1} parent=1 // loop_body
      %s22 = ssub.s32 %s17, 1
      %s23 = ssub.s32 %s17, 2
      %s30 = sadd.s32 1, %s25
      %p31 = scmp.ge.s32.totalorder %s30, 1
      %s32 = scalar_select %p31, 0, %s30
      %s33 = sadd.s32 1, %s24
      %s34 = scalar_select %p31, %s33, %s24
      %p35 = scmp.ge.s32.totalorder %s34, 2
      %s36 = scalar_select %p35, 0, %s34
      %s37 = sadd.s32 %s24, %s25
      %p38 = scmp.lt.s32.totalorder %s37, 1
      %s39 = scalar_select %p38, %s37, 1
      %s40 = sadd.s32 %s36, %s32
      %p41 = scmp.lt.s32.totalorder %s40, 1
      %s42 = scalar_select %p41, %s40, 1
      %s43 = ssub.s32 %s39, %s42
      %p44 = scmp.eq.s32.totalorder %s43, 0
      %s46 = sadd.s32 %s45, 1
      %s47 = scalar_select %p44, %s45, %s46
      %p50 = pneg %p44
      %p51 = scmp.eq.s32.totalorder %s17, 1
      %p52 = por %p50, %p51
      %p53 = scmp.ne.s32.totalorder %s45, %s48
      %p54 = scmp.eq.s32.totalorder %s17, 0
      %p55 = por %p53, %p54
      %p56 = scmp.ne.s32.totalorder %s45, %s48
      %p57 = scmp.eq.s32.totalorder %s22, 1
      %p58 = por %p56, %p57
      %p59 = scmp.ne.s32.totalorder %s48, %s49
      %p60 = scmp.eq.s32.totalorder %s22, 0
      %p61 = por %p59, %p60
      %p62 = scmp.ne.s32.totalorder %s48, %s49
      %p63 = scmp.eq.s32.totalorder %s23, 1
      %p64 = por %p62, %p63
      %p66 = scmp.ne.s32.totalorder %s49, %s65
      %p67 = scmp.eq.s32.totalorder %s23, 0
      %p68 = por %p66, %p67
      %s69 = sadd.s32 %s24, %s25
      %p70 = scmp.lt.s32.totalorder %s69, 1
      %s71 = scalar_select %p70, %s69, 1
      %s72 = sadd.s32 %s36, %s32
      %p73 = scmp.lt.s32.totalorder %s72, 1
      %s74 = scalar_select %p73, %s72, 1
      %s75 = ssub.s32 %s71, %s74
      %p76 = scmp.eq.s32.totalorder %s75, 0
      %s78 = sadd.s32 %s77, 1
      %s79 = scalar_select %p76, %s77, %s78
      %p82 = pneg %p76
      %p83 = scmp.eq.s32.totalorder %s17, 1
      %p84 = por %p82, %p83
      %p85 = scmp.ne.s32.totalorder %s77, %s80
      %p86 = scmp.eq.s32.totalorder %s17, 0
      %p87 = por %p85, %p86
      %p88 = scmp.ne.s32.totalorder %s77, %s80
      %p89 = scmp.eq.s32.totalorder %s22, 1
      %p90 = por %p88, %p89
      %p91 = scmp.ne.s32.totalorder %s80, %s81
      %p92 = scmp.eq.s32.totalorder %s22, 0
      %p93 = por %p91, %p92
      %p94 = scmp.ne.s32.totalorder %s80, %s81
      %p95 = scmp.eq.s32.totalorder %s23, 1
      %p96 = por %p94, %p95
      %p98 = scmp.ne.s32.totalorder %s81, %s97
      %p99 = scmp.eq.s32.totalorder %s23, 0
      %p100 = por %p98, %p99
      %s101 = ssub.s32 %s24, %s36
      %p102 = scmp.eq.s32.totalorder %s101, 0
      %s104 = sadd.s32 %s103, 1
      %s105 = scalar_select %p102, %s103, %s104
      %p108 = pneg %p102
      %p109 = scmp.eq.s32.totalorder %s17, 1
      %p110 = por %p108, %p109
      %p111 = scmp.ne.s32.totalorder %s103, %s106
      %p112 = scmp.eq.s32.totalorder %s17, 0
      %p113 = por %p111, %p112
      %p114 = scmp.ne.s32.totalorder %s103, %s106
      %p115 = scmp.eq.s32.totalorder %s22, 1
      %p116 = por %p114, %p115
      %p117 = scmp.ne.s32.totalorder %s106, %s107
      %p118 = scmp.eq.s32.totalorder %s22, 0
      %p119 = por %p117, %p118
      %p120 = scmp.ne.s32.totalorder %s106, %s107
      %p121 = scmp.eq.s32.totalorder %s23, 1
      %p122 = por %p120, %p121
      %p124 = scmp.ne.s32.totalorder %s107, %s123
      %p125 = scmp.eq.s32.totalorder %s23, 0
      %p126 = por %p124, %p125
      %p127 = scmp.le.s32.totalorder 1, %s17
      %p128 = scmp.lt.s32.totalorder %s17, 3
      %p129 = pnand %p127, %p128
      %p130 = pneg %p129
      // Predicated region
      $region9: #{tpu_custom_call.1} parent=5 // pred_check
        _
      $region10: #{tpu_custom_call.1} parent=5 // pred_check_branch
        %132 = sbr.rel (%p129) target = $region12
      $region11: #{tpu_custom_call.1} parent=5 // pred_region
        %s133 = ssub.s32 %s17, 1
      $region12: #{tpu_custom_call.1} parent=5 // pred_fallthru
        _
      %p134 = scmp.lt.s32.totalorder %s17, 2
      // Predicated region
      $region13: #{tpu_custom_call.1} parent=5 // pred_check
        %p135 = pneg %p134
      $region14: #{tpu_custom_call.1} parent=5 // pred_check_branch
        %137 = sbr.rel (%p135) target = $region16
      $region15: #{tpu_custom_call.1} parent=5 // pred_region
        // Predicated region
        $region17: #{tpu_custom_call.1} parent=15 // pred_check
          %p138 = pneg %p55
        $region18: #{tpu_custom_call.1} parent=15 // pred_check_branch
          %140 = sbr.rel (%p138) target = $region20
        $region19: #{tpu_custom_call.1} parent=15 // pred_region
          %s141 = sand.u32 %s45, 1
          %s142 = scalar_lea.sflag [#allocation3], %s141
          %s143 = sand.u32 %s45, 1
          %s144 = smul.addr %s143, 8
          %s145 = scalar_lea.vmem [#allocation2], %s144
          %s146 = sadd.s32 %s24, %s25
          %p147 = scmp.lt.s32.totalorder %s146, 1
          %s148 = scalar_select %p147, %s146, 1
          %s150 = ssub.s32 128, 128
          %151 = vsyncadd %s142, %s150
          %s152 = smul.addr %s148, 128
          %s153 = scalar_lea.hbm %s0, %s152
          %s155 = sshll.u32 %s145, 4
          %s156 = int_to_ptr.vmem [resolvable:$true] %s155
          %158 = dma.hbm_to_vmem [thread:$0]  %s153, 128, %s156, %s142
        $region20: #{tpu_custom_call.1} parent=15 // pred_fallthru
          _
        // Predicated region
        $region21: #{tpu_custom_call.1} parent=15 // pred_check
          %p159 = pneg %p87
        $region22: #{tpu_custom_call.1} parent=15 // pred_check_branch
          %161 = sbr.rel (%p159) target = $region24
        $region23: #{tpu_custom_call.1} parent=15 // pred_region
          %s162 = sand.u32 %s77, 1
          %s163 = scalar_lea.sflag [#allocation6], %s162
          %s164 = sand.u32 %s77, 1
          %s165 = smul.addr %s164, 8
          %s166 = scalar_lea.vmem [#allocation5], %s165
          %s167 = sadd.s32 %s24, %s25
          %p168 = scmp.lt.s32.totalorder %s167, 1
          %s169 = scalar_select %p168, %s167, 1
          %s171 = ssub.s32 128, 128
          %172 = vsyncadd %s163, %s171
          %s173 = smul.addr %s169, 128
          %s174 = scalar_lea.hbm %s1, %s173
          %s176 = sshll.u32 %s166, 4
          %s177 = int_to_ptr.vmem [resolvable:$true] %s176
          %179 = dma.hbm_to_vmem [thread:$0]  %s174, 128, %s177, %s163
        $region24: #{tpu_custom_call.1} parent=15 // pred_fallthru
          _
      $region16: #{tpu_custom_call.1} parent=5 // pred_fallthru
        _
      %p180 = scmp.le.s32.totalorder 1, %s17
      %p181 = scmp.lt.s32.totalorder %s17, 3
      %p182 = pnand %p180, %p181
      %p183 = pneg %p182
      // Predicated region
      $region25: #{tpu_custom_call.1} parent=5 // pred_check
        _
      $region26: #{tpu_custom_call.1} parent=5 // pred_check_branch
        %185 = sbr.rel (%p182) target = $region28
      $region27: #{tpu_custom_call.1} parent=5 // pred_region
        %s186 = ssub.s32 %s17, 1
        %s187 = sand.u32 %s48, 1
        %s188 = scalar_lea.sflag [#allocation3], %s187
        %s189 = sand.u32 %s48, 1
        %s190 = smul.addr %s189, 8
        %s191 = scalar_lea.vmem [#allocation2], %s190
        // Predicated region
        $region29: #{tpu_custom_call.1} parent=27 // pred_check
          %p192 = pneg %p61
        $region30: #{tpu_custom_call.1} parent=27 // pred_check_branch
          %194 = sbr.rel (%p192) target = $region32
        $region31: #{tpu_custom_call.1} parent=27 // pred_region
          %195 = dma.done %s188, 128
        $region32: #{tpu_custom_call.1} parent=27 // pred_fallthru
          _
        %s196 = sand.u32 %s80, 1
        %s197 = scalar_lea.sflag [#allocation6], %s196
        %s198 = sand.u32 %s80, 1
        %s199 = smul.addr %s198, 8
        %s200 = scalar_lea.vmem [#allocation5], %s199
        // Predicated region
        $region33: #{tpu_custom_call.1} parent=27 // pred_check
          %p201 = pneg %p93
        $region34: #{tpu_custom_call.1} parent=27 // pred_check_branch
          %203 = sbr.rel (%p201) target = $region36
        $region35: #{tpu_custom_call.1} parent=27 // pred_region
          %204 = dma.done %s197, 128
        $region36: #{tpu_custom_call.1} parent=27 // pred_fallthru
          _
        %s205 = sand.u32 %s48, 1
        %s206 = scalar_lea.sflag [#allocation3], %s205
        %s207 = sand.u32 %s48, 1
        %s208 = smul.addr %s207, 8
        %s209 = scalar_lea.vmem [#allocation2], %s208
        %p210 = pneg %p61
        %p211 = pneg %p58
        %s212 = sand.u32 %s80, 1
        %s213 = scalar_lea.sflag [#allocation6], %s212
        %s214 = sand.u32 %s80, 1
        %s215 = smul.addr %s214, 8
        %s216 = scalar_lea.vmem [#allocation5], %s215
        %p217 = pneg %p93
        %p218 = pneg %p90
        %p219 = pneg %p119
        %p220 = pneg %p116
        %s221 = sand.u32 %s106, 1
        %s222 = scalar_lea.sflag [#allocation4], %s221
        %s223 = sand.u32 %s106, 1
        %s224 = smul.addr %s223, 8
        %s225 = scalar_lea.vmem [#allocation7], %s224
        %s226 = sadd.s32 %s26, %s27
        %p227 = scmp.lt.s32.totalorder %s226, 1
        %s228 = scalar_select %p227, %s226, 1
        %s229 = sadd.s32 %s26, %s27
        %p230 = scmp.lt.s32.totalorder %s229, 1
        %s231 = scalar_select %p230, %s229, 1
        %p232 = scmp.eq.s32.totalorder %s27, 0
        // Predicated region
        $region37: #{tpu_custom_call.1} parent=27 // pred_check
          %p233 = pneg %p232
        $region38: #{tpu_custom_call.1} parent=27 // pred_check_branch
          %235 = sbr.rel (%p233) target = $region40
        $region39: #{tpu_custom_call.1} parent=27 // pred_region
          %236 = vst [vmem:[%s225] sm:$0xff] 0.0
        $region40: #{tpu_custom_call.1} parent=27 // pred_fallthru
          _
        %v237 = vld [vmem:[%s191] sm:$0xff]
        %v238 = vld [vmem:[%s200] sm:$0xff]
        %v239 = vmul.f32 %v238, 2.0
        %v240 = vsub.f32 %v239, 1.0
        %v241 = vmul.f32 %v237, %v240
        %v242 = vsub.f32 %v241, %v238
        %v243 = vld [vmem:[%s225] sm:$0xff]
        %v244 = vadd.f32 %v242, 0.0
        %v245 = vadd.f32 %v243, %v244
        %246 = vst [vmem:[%s225] sm:$0xff] %v245
        %s247 = sand.u32 %s106, 1
        %s248 = scalar_lea.sflag [#allocation4], %s247
        %s249 = sand.u32 %s106, 1
        %s250 = smul.addr %s249, 8
        %s251 = scalar_lea.vmem [#allocation7], %s250
        // Predicated region
        $region41: #{tpu_custom_call.1} parent=27 // pred_check
          %p252 = pneg %p116
        $region42: #{tpu_custom_call.1} parent=27 // pred_check_branch
          %254 = sbr.rel (%p252) target = $region44
        $region43: #{tpu_custom_call.1} parent=27 // pred_region
          %s256 = ssub.s32 128, 128
          %257 = vsyncadd %s248, %s256
          %s258 = smul.addr %s26, 128
          %s259 = scalar_lea.hbm %s2, %s258
          %s261 = sshll.u32 %s251, 4
          %s262 = int_to_ptr.vmem [resolvable:$true] %s261
          %264 = dma.vmem_to_hbm [thread:$0]  %s262, 128, %s259, %s248
        $region44: #{tpu_custom_call.1} parent=27 // pred_fallthru
          _
      $region28: #{tpu_custom_call.1} parent=5 // pred_fallthru
        _
      %p265 = scmp.le.s32.totalorder 2, %s17
      // Predicated region
      $region45: #{tpu_custom_call.1} parent=5 // pred_check
        %p266 = pneg %p265
      $region46: #{tpu_custom_call.1} parent=5 // pred_check_branch
        %268 = sbr.rel (%p266) target = $region48
      $region47: #{tpu_custom_call.1} parent=5 // pred_region
        %s269 = ssub.s32 %s17, 2
        // Predicated region
        $region49: #{tpu_custom_call.1} parent=47 // pred_check
          %p270 = pneg %p122
        $region50: #{tpu_custom_call.1} parent=47 // pred_check_branch
          %272 = sbr.rel (%p270) target = $region52
        $region51: #{tpu_custom_call.1} parent=47 // pred_region
          %s273 = sand.u32 %s107, 1
          %s274 = scalar_lea.sflag [#allocation4], %s273
          %s275 = sand.u32 %s107, 1
          %s276 = smul.addr %s275, 8
          %s277 = scalar_lea.vmem [#allocation7], %s276
          %278 = dma.done %s274, 128
        $region52: #{tpu_custom_call.1} parent=47 // pred_fallthru
          _
      $region48: #{tpu_custom_call.1} parent=5 // pred_fallthru
        _
    $region6: #{tpu_custom_call.1} parent=1 // loop_footer
      %s21 = sadd.s32 1, %s17
    $region7: #{tpu_custom_call.1} parent=1 // loop_footer_branch
      %16 = sbr.rel target = $region3
    $region8: #{tpu_custom_call.1} parent=1 // loop_exit
      _
    %279 = vsyncpa [#allocation3], 1
    %s280 = scalar_lea.sflag [#allocation3], 1
    %281 = vsyncpa %s280, 1
    %282 = vsyncpa [#allocation6], 1
    %s283 = scalar_lea.sflag [#allocation6], 1
    %284 = vsyncpa %s283, 1
    %285 = vsyncpa [#allocation4], 1
    %s286 = scalar_lea.sflag [#allocation4], 1
    %287 = vsyncpa %s286, 1

</llo_original>
